<compile_context>
chip_gen: v7x
topology: tpu7x:2x2x1
jax: 0.10.0
libtpu: 0.0.40
codegen_flags: <defaults>
</compile_context>

<pallas_src>
import functools

import jax
import jax.numpy as jnp
from jax.experimental import pallas as pl
from jax.experimental.pallas import tpu as pltpu


_EPSILON = 1e-10
_LANE = 128


def _round_up(x, m):
    return ((x + m - 1) // m) * m


def _cdiv(a, b):
    return -(-a // b)


def _vmem_budget():
    """(per-array tile byte target, scoped vmem limit), derived from the chip."""
    cap = None
    try:
        info = pltpu.get_tpu_info()
        cap = getattr(info, "vmem_capacity_bytes", None)
    except Exception:  # pragma: no cover - defensive, interpret mode etc.
        cap = None
    if not cap:
        cap = 64 * 1024 * 1024  # conservative default: v7x per-TC VMEM
    cap = int(cap)
    # 4 streams (2 in + 2 out) x 2 pipeline buffers => ~cap/2 resident.
    tile_bytes = max(1 << 20, cap // 16)
    vmem_limit = min((cap * 3) // 4, 112 * 1024 * 1024)
    return int(tile_bytes), int(vmem_limit)


def _choose_row_tile(rows, row_bytes, min_sublane, tile_bytes):
    """Row tile for the single-pass path.

    Largest multiple of min_sublane that keeps one tile under tile_bytes,
    while giving the grid at least 2 (ideally 4) steps so v7x's second
    TensorCore has work.  If a single block would cover all rows, use the
    full row count (a full-dim block is always layout-legal) instead of a
    padded-up tile.  Never degrades to tiny divisor-hunting tiles.
    """
    cap = tile_bytes // max(1, row_bytes)
    cap = max(min_sublane, (cap // min_sublane) * min_sublane)
    if rows >= 4 * min_sublane:
        target_steps = 4
    elif rows >= 2 * min_sublane:
        target_steps = 2
    else:
        target_steps = 1
    want = _round_up(_cdiv(rows, target_steps), min_sublane)
    row_tile = min(cap, want)
    if row_tile >= rows:
        row_tile = rows  # single full-dim block on the row axis
    return row_tile


# --------------------------------------------------------------------------
# Single-pass kernel: block spans the full hw axis.
# --------------------------------------------------------------------------
def _cab_single_pass_kernel(x1_ref, x2_ref, o1_ref, o2_ref, *, inv_hw):
    # Per-row (= per (n, c) plane) mean accumulated in f32.  The block spans
    # the full hw axis, so there is no lane-tail garbage in the sum; garbage
    # rows from a ragged trailing row block only affect their own (dropped)
    # stores.
    s1 = jnp.sum(x1_ref[...], axis=-1, keepdims=True, dtype=jnp.float32)
    s2 = jnp.sum(x2_ref[...], axis=-1, keepdims=True, dtype=jnp.float32)
    ca1 = s1 * inv_hw
    ca2 = s2 * inv_hw
    # Softmax-style channel masks on tiny (rows, 1) f32 vectors: exp and the
    # reciprocal land on the EUP slot; one reciprocal replaces two divides.
    # The bare exp() intentionally matches the PyTorch reference (it can
    # overflow for per-plane means > ~88, exactly like the reference).
    e1 = jnp.exp(ca1)
    e2 = jnp.exp(ca2)
    inv_denom = pl.reciprocal(e1 + e2 + _EPSILON, approx=False)
    mask1 = (e1 * inv_denom).astype(o1_ref.dtype)
    mask2 = (e2 * inv_denom).astype(o2_ref.dtype)
    # Re-read the tiles at the point of use (vld is cheap and hidden under the
    # HBM DMA) instead of keeping a multi-MiB value live across the mask math.
    o1_ref[...] = (x1_ref[...] * mask1).astype(o1_ref.dtype)
    o2_ref[...] = (x2_ref[...] * mask2).astype(o2_ref.dtype)


# --------------------------------------------------------------------------
# Two-pass fallback for large H*W (VMEM residency guard).
# --------------------------------------------------------------------------
def _cab_reduce_kernel(x1_ref, x2_ref, m1_ref, m2_ref, s1_acc, s2_acc, *,
                       inv_hw, hw, hw_tile, need_lane_mask):
    j = pl.program_id(1)

    @pl.when(j == 0)
    def _():
        s1_acc[...] = jnp.zeros_like(s1_acc)
        s2_acc[...] = jnp.zeros_like(s2_acc)

    x1 = x1_ref[...]
    x2 = x2_ref[...]
    if need_lane_mask:
        # hw % hw_tile != 0: zero the lane tail of the ragged last chunk so
        # the per-row sum only sees real elements.
        col = j * hw_tile + jax.lax.broadcasted_iota(jnp.int32, x1.shape, 1)
        valid = col < hw
        x1 = jnp.where(valid, x1, jnp.zeros_like(x1))
        x2 = jnp.where(valid, x2, jnp.zeros_like(x2))
    s1_acc[...] += jnp.sum(x1, axis=-1, keepdims=True, dtype=jnp.float32)
    s2_acc[...] += jnp.sum(x2, axis=-1, keepdims=True, dtype=jnp.float32)

    @pl.when(j == pl.num_programs(1) - 1)
    def _():
        ca1 = s1_acc[...] * inv_hw
        ca2 = s2_acc[...] * inv_hw
        e1 = jnp.exp(ca1)
        e2 = jnp.exp(ca2)
        inv_denom = pl.reciprocal(e1 + e2 + _EPSILON, approx=False)
        m1_ref[...] = (e1 * inv_denom).astype(m1_ref.dtype)
        m2_ref[...] = (e2 * inv_denom).astype(m2_ref.dtype)


def _cab_apply_kernel(m1_ref, m2_ref, x1_ref, x2_ref, o1_ref, o2_ref):
    mask1 = m1_ref[...].astype(o1_ref.dtype)
    mask2 = m2_ref[...].astype(o2_ref.dtype)
    o1_ref[...] = (x1_ref[...] * mask1).astype(o1_ref.dtype)
    o2_ref[...] = (x2_ref[...] * mask2).astype(o2_ref.dtype)


# --------------------------------------------------------------------------
# Wrapper
# --------------------------------------------------------------------------
def channel_attention_block(x1, x2, *, max_tile_bytes=None):
    """x1, x2: NCHW arrays of identical shape/dtype. Returns (x1_a, x2_a)."""
    assert x1.shape == x2.shape, "x1 and x2 must have identical shapes"
    assert x1.dtype == x2.dtype, "x1 and x2 must have identical dtypes"
    N, C, H, W = x1.shape
    rows = N * C
    hw = H * W
    dtype = x1.dtype

    itemsize = jnp.dtype(dtype).itemsize
    # Minimum sublane tile for packed dtypes: 8 (f32), 16 (bf16), 32 (int8/fp8).
    min_sublane = max(8, 32 // itemsize)

    tile_bytes, vmem_limit = _vmem_budget()
    if max_tile_bytes is not None:  # test / tuning hook
        tile_bytes = int(max_tile_bytes)

    x1f = x1.reshape(rows, hw)
    x2f = x2.reshape(rows, hw)

    single_pass = min_sublane * hw * itemsize <= tile_bytes

    if single_pass:
        row_tile = _choose_row_tile(rows, hw * itemsize, min_sublane, tile_bytes)
        grid = (_cdiv(rows, row_tile),)
        spec = pl.BlockSpec((row_tile, hw), lambda i: (i, 0))
        kernel = functools.partial(_cab_single_pass_kernel, inv_hw=1.0 / hw)

        o1f, o2f = pl.pallas_call(
            kernel,
            out_shape=(
                jax.ShapeDtypeStruct((rows, hw), dtype),
                jax.ShapeDtypeStruct((rows, hw), dtype),
            ),
            grid_spec=pltpu.PrefetchScalarGridSpec(
                num_scalar_prefetch=0,
                grid=grid,
                in_specs=[spec, spec],
                out_specs=[spec, spec],
            ),
            compiler_params=pltpu.CompilerParams(
                dimension_semantics=("parallel",),
                vmem_limit_bytes=vmem_limit,
            ),
        )(x1f, x2f)
    else:
        # ---- Two-pass path: tile both axes (residency guard for large H*W).
        row_tile = min(_round_up(rows, min_sublane), 8 * min_sublane)
        if row_tile >= rows:
            row_tile = rows  # full-dim block on the row axis
        hw_tile = (tile_bytes // max(1, row_tile * itemsize)) // _LANE * _LANE
        hw_tile = max(_LANE, min(hw_tile, (hw // _LANE) * _LANE))

        num_row = _cdiv(rows, row_tile)
        num_hw = _cdiv(hw, hw_tile)
        need_lane_mask = (hw % hw_tile) != 0

        x_spec = pl.BlockSpec((row_tile, hw_tile), lambda i, j: (i, j))
        m_spec = pl.BlockSpec((row_tile, 1), lambda i, j: (i, 0))

        reduce_kernel = functools.partial(
            _cab_reduce_kernel,
            inv_hw=1.0 / hw, hw=hw, hw_tile=hw_tile,
            need_lane_mask=need_lane_mask,
        )
        m1, m2 = pl.pallas_call(
            reduce_kernel,
            out_shape=(
                jax.ShapeDtypeStruct((rows, 1), jnp.float32),
                jax.ShapeDtypeStruct((rows, 1), jnp.float32),
            ),
            grid_spec=pltpu.PrefetchScalarGridSpec(
                num_scalar_prefetch=0,
                grid=(num_row, num_hw),
                in_specs=[x_spec, x_spec],
                out_specs=[m_spec, m_spec],
                scratch_shapes=[
                    pltpu.VMEM((row_tile, 1), jnp.float32),
                    pltpu.VMEM((row_tile, 1), jnp.float32),
                ],
            ),
            compiler_params=pltpu.CompilerParams(
                dimension_semantics=("parallel", "arbitrary"),
                vmem_limit_bytes=vmem_limit,
            ),
        )(x1f, x2f)

        o1f, o2f = pl.pallas_call(
            _cab_apply_kernel,
            out_shape=(
                jax.ShapeDtypeStruct((rows, hw), dtype),
                jax.ShapeDtypeStruct((rows, hw), dtype),
            ),
            grid_spec=pltpu.PrefetchScalarGridSpec(
                num_scalar_prefetch=0,
                grid=(num_row, num_hw),
                in_specs=[m_spec, m_spec, x_spec, x_spec],
                out_specs=[x_spec, x_spec],
            ),
            compiler_params=pltpu.CompilerParams(
                dimension_semantics=("parallel", "parallel"),
                vmem_limit_bytes=vmem_limit,
            ),
        )(m1, m2, x1f, x2f)

    return o1f.reshape(N, C, H, W), o2f.reshape(N, C, H, W)


def _reference(x1, x2):
    EPSILON = 1e-10
    ca1 = jnp.mean(x1, axis=(2, 3), keepdims=True)
    ca2 = jnp.mean(x2, axis=(2, 3), keepdims=True)
    mask1 = jnp.exp(ca1) / (jnp.exp(ca2) + jnp.exp(ca1) + EPSILON)
    mask2 = jnp.exp(ca2) / (jnp.exp(ca1) + jnp.exp(ca2) + EPSILON)
    return mask1 * x1, mask2 * x2


if __name__ == "__main__":
    key = jax.random.PRNGKey(0)
    k1, k2, k3, k4 = jax.random.split(key, 4)

    # Primary small test consistent with the module: batch=2, channels=4, 16x16.
    N, C, H, W = 2, 4, 16, 16
    x1 = jax.random.normal(k1, (N, C, H, W), dtype=jnp.float32)
    x2 = jax.random.normal(k2, (N, C, H, W), dtype=jnp.float32)

    out1, out2 = channel_attention_block(x1, x2)
    jax.block_until_ready((out1, out2))
    ref1, ref2 = _reference(x1, x2)
    assert jnp.allclose(out1, ref1, atol=1e-5, rtol=1e-5)
    assert jnp.allclose(out2, ref2, atol=1e-5, rtol=1e-5)

    # Ragged shapes: rows (=N*C) not a multiple of the row tile and H*W not a
    # multiple of 128 -> exercises the in-kernel remainder handling (no
    # wrapper pad / slice copies).
    Nr, Cr, Hr, Wr = 5, 4, 9, 9
    y1 = jax.random.normal(k3, (Nr, Cr, Hr, Wr), dtype=jnp.float32)
    y2 = jax.random.normal(k4, (Nr, Cr, Hr, Wr), dtype=jnp.float32)
    ro1, ro2 = channel_attention_block(y1, y2)
    jax.block_until_ready((ro1, ro2))
    rref1, rref2 = _reference(y1, y2)
    assert jnp.allclose(ro1, rref1, atol=1e-5, rtol=1e-5)
    assert jnp.allclose(ro2, rref2, atol=1e-5, rtol=1e-5)

    # Force the two-pass (large-H*W residency guard) path at a small shape by
    # shrinking the per-tile budget, to verify it compiles and is correct.
    to1, to2 = channel_attention_block(x1, x2, max_tile_bytes=2048)
    jax.block_until_ready((to1, to2))
    assert jnp.allclose(to1, ref1, atol=1e-5, rtol=1e-5)
    assert jnp.allclose(to2, ref2, atol=1e-5, rtol=1e-5)

    print("KERNEL_OK")
</pallas_src>

<mosaic_0001>
module attributes {stable_mosaic.version = 11 : i64} {
  func.func @_cab_single_pass_kernel(%arg0: i32, %arg1: memref<8x256xf32, #tpu.memory_space<vmem>>, %arg2: memref<8x256xf32, #tpu.memory_space<vmem>>, %arg3: memref<8x256xf32, #tpu.memory_space<vmem>>, %arg4: memref<8x256xf32, #tpu.memory_space<vmem>>) attributes {dimension_semantics = [#tpu.dimension_semantics<parallel>], iteration_bounds = array<i64: 1>, scalar_prefetch = 0 : i64, scratch_operands = 0 : i64, tpu.core_type = #tpu.core_type<tc>, window_params = [{transform_indices = @transform_0, window_bounds = array<i64: 8, 256>}, {transform_indices = @transform_1, window_bounds = array<i64: 8, 256>}, {transform_indices = @transform_2, window_bounds = array<i64: 8, 256>}, {transform_indices = @transform_3, window_bounds = array<i64: 8, 256>}]} {
    %c0 = arith.constant 0 : index
    %c0_0 = arith.constant 0 : index
    %0 = vector.load %arg1[%c0, %c0_0] : memref<8x256xf32, #tpu.memory_space<vmem>>, vector<8x256xf32>
    %cst = arith.constant dense<0.000000e+00> : vector<8xf32>
    %1 = vector.multi_reduction <add>, %0, %cst [1] : vector<8x256xf32> to vector<8xf32>
    %2 = vector.shape_cast %1 : vector<8xf32> to vector<8x1xf32>
    %c0_1 = arith.constant 0 : index
    %c0_2 = arith.constant 0 : index
    %3 = vector.load %arg2[%c0_1, %c0_2] : memref<8x256xf32, #tpu.memory_space<vmem>>, vector<8x256xf32>
    %cst_3 = arith.constant dense<0.000000e+00> : vector<8xf32>
    %4 = vector.multi_reduction <add>, %3, %cst_3 [1] : vector<8x256xf32> to vector<8xf32>
    %5 = vector.shape_cast %4 : vector<8xf32> to vector<8x1xf32>
    %cst_4 = arith.constant 3.906250e-03 : f32
    %6 = vector.broadcast %cst_4 : f32 to vector<8x1xf32>
    %7 = arith.mulf %2, %6 : vector<8x1xf32>
    %cst_5 = arith.constant 3.906250e-03 : f32
    %8 = vector.broadcast %cst_5 : f32 to vector<8x1xf32>
    %9 = arith.mulf %5, %8 : vector<8x1xf32>
    %10 = math.exp %7 : vector<8x1xf32>
    %11 = math.exp %9 : vector<8x1xf32>
    %12 = arith.addf %10, %11 : vector<8x1xf32>
    %cst_6 = arith.constant 1.000000e-10 : f32
    %13 = vector.broadcast %cst_6 : f32 to vector<8x1xf32>
    %14 = arith.addf %12, %13 : vector<8x1xf32>
    %15 = tpu.reciprocal %14 : vector<8x1xf32> -> vector<8x1xf32>
    %16 = arith.mulf %10, %15 : vector<8x1xf32>
    %17 = arith.mulf %11, %15 : vector<8x1xf32>
    %c0_7 = arith.constant 0 : index
    %c0_8 = arith.constant 0 : index
    %18 = vector.load %arg1[%c0_7, %c0_8] : memref<8x256xf32, #tpu.memory_space<vmem>>, vector<8x256xf32>
    %19 = vector.broadcast %16 : vector<8x1xf32> to vector<8x256xf32>
    %20 = arith.mulf %18, %19 : vector<8x256xf32>
    %c0_9 = arith.constant 0 : index
    %c0_10 = arith.constant 0 : index
    %21 = vector.load %arg3[%c0_9, %c0_10] : memref<8x256xf32, #tpu.memory_space<vmem>>, vector<8x256xf32>
    tpu.vector_store %arg3[%c0_9, %c0_10], %20 {strides = array<i32>} : memref<8x256xf32, #tpu.memory_space<vmem>>, vector<8x256xf32>,
    %c0_11 = arith.constant 0 : index
    %c0_12 = arith.constant 0 : index
    %22 = vector.load %arg2[%c0_11, %c0_12] : memref<8x256xf32, #tpu.memory_space<vmem>>, vector<8x256xf32>
    %23 = vector.broadcast %17 : vector<8x1xf32> to vector<8x256xf32>
    %24 = arith.mulf %22, %23 : vector<8x256xf32>
    %c0_13 = arith.constant 0 : index
    %c0_14 = arith.constant 0 : index
    %25 = vector.load %arg4[%c0_13, %c0_14] : memref<8x256xf32, #tpu.memory_space<vmem>>, vector<8x256xf32>
    tpu.vector_store %arg4[%c0_13, %c0_14], %24 {strides = array<i32>} : memref<8x256xf32, #tpu.memory_space<vmem>>, vector<8x256xf32>,
    return
  }
  func.func @transform_0(%arg0: i32) -> (i32, i32) {
    %c0_i32 = arith.constant 0 : i32
    %c0_i32_0 = arith.constant 0 : i32
    return %arg0, %c0_i32 : i32, i32
  }
  func.func @transform_1(%arg0: i32) -> (i32, i32) {
    %c0_i32 = arith.constant 0 : i32
    %c0_i32_0 = arith.constant 0 : i32
    return %arg0, %c0_i32 : i32, i32
  }
  func.func @transform_2(%arg0: i32) -> (i32, i32) {
    %c0_i32 = arith.constant 0 : i32
    %c0_i32_0 = arith.constant 0 : i32
    return %arg0, %c0_i32 : i32, i32
  }
  func.func @transform_3(%arg0: i32) -> (i32, i32) {
    %c0_i32 = arith.constant 0 : i32
    %c0_i32_0 = arith.constant 0 : i32
    return %arg0, %c0_i32 : i32, i32
  }
}

</mosaic_0001>

<llo_original>
// kernel: tpu_custom_call.1
$region0: #{tpu_custom_call.1}
  #allocation0 [shape = 'u32[]', space=smem, size = 0x4, offset = 0x4, fixed_abs, tag = 'smem constant byte address 0x4 - core index']
  #allocation1 [shape = 'u32[144,128]{1,0:T(1,128)}', space=vmem, size = 0x12000, scoped, tag = 'internal scratch']
  %s0 = inlined_call_operand.hbm [shape: f32[8,256], index: 0, kind: input, shape index: {}]
  %s1 = inlined_call_operand.hbm [shape: f32[8,256], index: 1, kind: input, shape index: {}]
  %s2 = inlined_call_operand.hbm [shape: f32[8,256], index: 2, kind: output, shape index: {0}]
  %s3 = inlined_call_operand.hbm [shape: f32[8,256], index: 3, kind: output, shape index: {1}]
  %4 = xla_tuple %s2, %s3
  %s5 = sld [smem:[#allocation0]]
  $region34: #{tpu_custom_call.1} parent=0
    _
  %s7 = ssub.s32 1, %s5
  %s8 = scalar_select 0, %s7, %s5
  $region1: #{tpu_custom_call.1} parent=0
    #allocation2 [shape = 'u8[8192]{0}', space=vmem, size = 0x2000, scoped, tag = 'input window, operand 0, single buffered']
    #allocation3 [shape = 's32[1]{0}', space=sflag, size = 0x4, scoped, tag = 'scoped memory for tpu_custom_call.1']
    #allocation4 [shape = 's32[1]{0}', space=sflag, size = 0x4, scoped, tag = 'scoped memory for tpu_custom_call.1']
    #allocation5 [shape = 'u8[8192]{0}', space=vmem, size = 0x2000, scoped, tag = 'input window, operand 1, single buffered']
    #allocation6 [shape = 's32[1]{0}', space=sflag, size = 0x4, scoped, tag = 'scoped memory for tpu_custom_call.1']
    #allocation7 [shape = 'u8[8192]{0}', space=vmem, size = 0x2000, scoped, tag = 'output window, operand 0, single buffered']
    #allocation8 [shape = 'u8[8192]{0}', space=vmem, size = 0x2000, scoped, tag = 'output window, operand 1, single buffered']
    #allocation9 [shape = 's32[1]{0}', space=sflag, size = 0x4, scoped, tag = 'scoped memory for tpu_custom_call.1']
    %9 = vsyncpa [#allocation3], 0
    %10 = vsyncpa [#allocation6], 0
    %11 = vsyncpa [#allocation4], 0
    %12 = vsyncpa [#allocation9], 0
    // Predicated region
    $region2: #{tpu_custom_call.1} parent=1 // pred_check
      _
    $region3: #{tpu_custom_call.1} parent=1 // pred_check_branch
      %14 = sbr.rel (0) target = $region5
    $region4: #{tpu_custom_call.1} parent=1 // pred_region
      %s16 = ssub.s32 256, 256
      %17 = vsyncadd [#allocation3], %s16
      %s19 = sshll.u32 [#allocation2], 4
      %s20 = int_to_ptr.vmem [resolvable:$true] %s19
      %22 = dma.hbm_to_vmem [thread:$0]  %s0, 256, %s20, [#allocation3]
    $region5: #{tpu_custom_call.1} parent=1 // pred_fallthru
      _
    // Predicated region
    $region6: #{tpu_custom_call.1} parent=1 // pred_check
      _
    $region7: #{tpu_custom_call.1} parent=1 // pred_check_branch
      %24 = sbr.rel (0) target = $region9
    $region8: #{tpu_custom_call.1} parent=1 // pred_region
      %s26 = ssub.s32 256, 256
      %27 = vsyncadd [#allocation6], %s26
      %s29 = sshll.u32 [#allocation5], 4
      %s30 = int_to_ptr.vmem [resolvable:$true] %s29
      %32 = dma.hbm_to_vmem [thread:$0]  %s1, 256, %s30, [#allocation6]
    $region9: #{tpu_custom_call.1} parent=1 // pred_fallthru
      _
    // Predicated region
    $region10: #{tpu_custom_call.1} parent=1 // pred_check
      _
    $region11: #{tpu_custom_call.1} parent=1 // pred_check_branch
      %34 = sbr.rel (0) target = $region13
    $region12: #{tpu_custom_call.1} parent=1 // pred_region
      %35 = dma.done [#allocation3], 256
    $region13: #{tpu_custom_call.1} parent=1 // pred_fallthru
      _
    // Predicated region
    $region14: #{tpu_custom_call.1} parent=1 // pred_check
      _
    $region15: #{tpu_custom_call.1} parent=1 // pred_check_branch
      %37 = sbr.rel (0) target = $region17
    $region16: #{tpu_custom_call.1} parent=1 // pred_region
      %38 = dma.done [#allocation6], 256
    $region17: #{tpu_custom_call.1} parent=1 // pred_fallthru
      _
    %v39 = vld [vmem:[#allocation2] sm:$0xff]
    %v40 = vld [vmem:[#allocation2 + $0x8] sm:$0xff]
    %v41 = vadd.f32 %v39, %v40
    %42 = vadd.xlane.f32.xlu0 %v41
    %v43 = vpop.xlane.xlu0 %42
    %v44 = vld [vmem:[#allocation5] sm:$0xff]
    %v45 = vld [vmem:[#allocation5 + $0x8] sm:$0xff]
    %v46 = vadd.f32 %v44, %v45
    %47 = vadd.xlane.f32.xlu0 %v46
    %v48 = vpop.xlane.xlu0 %47
    %v49 = vmul.f32 %v43, 0.00390625
    %v50 = vmul.f32 %v48, 0.00390625
    %v51 = vmul.f32 %v49, 1.442695
    %v52 = vpow.pop %v51
    %v53 = vmul.f32 %v50, 1.442695
    %v54 = vpow.pop %v53
    %v55 = vadd.f32 %v52, %v54
    %v56 = vadd.f32 %v55, 1e-10
    %v57 = vrcp.pop %v56
    %v58 = vmul.f32 %v52, %v57
    %v59 = vmul.f32 %v54, %v57
    %v60 = vmul.f32 %v39, %v58
    %v61 = vmul.f32 %v40, %v58
    %62 = vst [vmem:[#allocation7] sm:$0xff] %v60
    %63 = vst [vmem:[#allocation7 + $0x8] sm:$0xff] %v61
    %v64 = vld [vmem:[#allocation5] sm:$0xff]
    %v65 = vld [vmem:[#allocation5 + $0x8] sm:$0xff]
    %v66 = vmul.f32 %v64, %v59
    %v67 = vmul.f32 %v65, %v59
    %68 = vst [vmem:[#allocation8] sm:$0xff] %v66
    %69 = vst [vmem:[#allocation8 + $0x8] sm:$0xff] %v67
    // Predicated region
    $region18: #{tpu_custom_call.1} parent=1 // pred_check
      _
    $region19: #{tpu_custom_call.1} parent=1 // pred_check_branch
      %71 = sbr.rel (0) target = $region21
    $region20: #{tpu_custom_call.1} parent=1 // pred_region
      %s73 = ssub.s32 256, 256
      %74 = vsyncadd [#allocation4], %s73
      %s76 = sshll.u32 [#allocation7], 4
      %s77 = int_to_ptr.vmem [resolvable:$true] %s76
      %79 = dma.vmem_to_hbm [thread:$0]  %s77, 256, %s2, [#allocation4]
    $region21: #{tpu_custom_call.1} parent=1 // pred_fallthru
      _
    // Predicated region
    $region22: #{tpu_custom_call.1} parent=1 // pred_check
      _
    $region23: #{tpu_custom_call.1} parent=1 // pred_check_branch
      %81 = sbr.rel (0) target = $region25
    $region24: #{tpu_custom_call.1} parent=1 // pred_region
      %s83 = ssub.s32 256, 256
      %84 = vsyncadd [#allocation9], %s83
      %s86 = sshll.u32 [#allocation8], 4
      %s87 = int_to_ptr.vmem [resolvable:$true] %s86
      %89 = dma.vmem_to_hbm [thread:$0]  %s87, 256, %s3, [#allocation9]
    $region25: #{tpu_custom_call.1} parent=1 // pred_fallthru
      _
    // Predicated region
    $region26: #{tpu_custom_call.1} parent=1 // pred_check
      _
    $region27: #{tpu_custom_call.1} parent=1 // pred_check_branch
      %91 = sbr.rel (0) target = $region29
    $region28: #{tpu_custom_call.1} parent=1 // pred_region
      %92 = dma.done [#allocation4], 256
    $region29: #{tpu_custom_call.1} parent=1 // pred_fallthru
      _
    // Predicated region
    $region30: #{tpu_custom_call.1} parent=1 // pred_check
      _
    $region31: #{tpu_custom_call.1} parent=1 // pred_check_branch
      %94 = sbr.rel (0) target = $region33
    $region32: #{tpu_custom_call.1} parent=1 // pred_region
      %95 = dma.done [#allocation9], 256
    $region33: #{tpu_custom_call.1} parent=1 // pred_fallthru
      _
    %96 = vsyncpa [#allocation3], 1
    %97 = vsyncpa [#allocation6], 1
    %98 = vsyncpa [#allocation4], 1
    %99 = vsyncpa [#allocation9], 1

</llo_original>
